<compile_context>
chip_gen: v5e
topology: v5e:2x2
jax: 0.10.0
libtpu: 0.0.40
codegen_flags: <defaults>
</compile_context>

<pallas_src>
import jax
import jax.numpy as jnp
from jax.experimental import pallas as pl
from jax.experimental.pallas import tpu as pltpu


def eca_kernel(w_ref, x_ref, o_ref):
    # w_ref: SMEM (1,) center conv tap; x_ref/o_ref: VMEM (TB, L) tiles.
    x = x_ref[...]

    # AdaptiveAvgPool1d(1): per-row mean over the lane axis, accumulated in f32.
    pooled = jnp.mean(x.astype(jnp.float32), axis=-1, keepdims=True)   # (TB, 1)

    # Conv1d on a length-1 zero-padded sequence == multiply by the center tap.
    # Gate folded with the residual: x*sigmoid(.) + x == x * (sigmoid(.) + 1).
    gate = jax.nn.sigmoid(pooled * w_ref[0]) + 1.0                     # (TB, 1) f32

    # TODO(synk): training-mode dropout on the gate (random mask + 1/(1-p)) not implemented.
    # Wide multiply in the native dtype; gate column cast once.
    o_ref[...] = x * gate.astype(x.dtype)


def _sublane_pack(itemsize):
    # Sublane packing factor: 8 rows for 4-byte, 16 for 2-byte, 32 for 1-byte dtypes.
    return max(8, 32 // max(1, itemsize))


def _choose_block_rows(B, L, itemsize):
    """Largest packing-aligned row tile keeping the pipelined VMEM footprint small.

    Double buffering of input+output tiles costs ~4 * TB * L * itemsize bytes;
    targeting ~2 MiB per tile buffer (<= ~8 MiB total) stays safely under every
    generation's scoped-VMEM default while remaining in the 2-8 MiB payload
    range that reaches ~85% of the HBM roofline.
    """
    pack = _sublane_pack(itemsize)
    target_tile_bytes = 2 << 20
    tb = target_tile_bytes // max(1, L * itemsize)
    tb = max(pack, (int(tb) // pack) * pack)   # sublane-packing aligned
    tb = min(tb, 1024)
    if tb >= B:
        return B                               # single block covering the full batch dim
    return tb


def eca_forward(x, conv_weight, *, block_rows=None):
    """x: (B, L); conv_weight: (1, 1, k) float32 (PyTorch Conv1d layout)."""
    B, L = x.shape
    k = conv_weight.shape[-1]
    # Only the center tap matters for a length-1 sequence with zero padding.
    w_center = conv_weight.reshape(k)[(k - 1) // 2].reshape(1).astype(jnp.float32)

    itemsize = jnp.dtype(x.dtype).itemsize
    tb = block_rows if block_rows is not None else _choose_block_rows(B, L, itemsize)
    tb = min(tb, B)
    grid = (pl.cdiv(B, tb),)

    # NOTE: each block spans the full feature axis L, so the (8,128) BlockSpec
    # constraint on the lane dim is satisfied even when L % 128 != 0 (only the
    # ragged lane tail, if any, gets masked stores).
    return pl.pallas_call(
        eca_kernel,
        out_shape=jax.ShapeDtypeStruct((B, L), x.dtype),
        grid=grid,
        in_specs=[
            pl.BlockSpec(memory_space=pltpu.MemorySpace.SMEM),   # center conv tap (1,)
            pl.BlockSpec((tb, L), lambda i: (i, 0)),             # row tile of x
        ],
        out_specs=pl.BlockSpec((tb, L), lambda i: (i, 0)),
        compiler_params=pltpu.CompilerParams(
            # Rows are independent -> shard the row grid across v7x's 2 TCs.
            dimension_semantics=("parallel",),
        ),
        cost_estimate=pl.CostEstimate(
            flops=3 * B * L,
            transcendentals=B,
            bytes_accessed=2 * B * L * itemsize,
        ),
    )(w_center, x)


def eca_reference(x, conv_weight):
    """Pure-JAX reference mirroring the PyTorch forward (eval mode)."""
    k = conv_weight.shape[-1]
    w_center = conv_weight.reshape(k)[(k - 1) // 2]
    pooled = jnp.mean(x.astype(jnp.float32), axis=-1, keepdims=True)
    y = jax.nn.sigmoid(pooled * w_center)
    return (x * y.astype(x.dtype) + x).astype(x.dtype)


if __name__ == "__main__":
    key = jax.random.PRNGKey(0)
    kx, kw = jax.random.split(key)

    B, L, K = 16, 256, 3
    x = jax.random.normal(kx, (B, L), dtype=jnp.float32)
    # Deterministic synthetic conv weight, shape (out=1, in=1, k) like nn.Conv1d.
    conv_weight = jax.random.normal(kw, (1, 1, K), dtype=jnp.float32) * 0.5

    ref = eca_reference(x, conv_weight)

    # Default tiling (single block at this toy size).
    out = jax.block_until_ready(eca_forward(x, conv_weight))
    assert out.shape == (B, L)
    assert jnp.allclose(out, ref, atol=1e-5, rtol=1e-5)

    # Force a multi-step grid (TB=8 -> 2 grid steps) to exercise the pipelined path.
    out_tiled = jax.block_until_ready(eca_forward(x, conv_weight, block_rows=8))
    assert jnp.allclose(out_tiled, ref, atol=1e-5, rtol=1e-5)

    # bf16 path exercises the 16-row sublane packing and native-dtype multiply.
    xb = x.astype(jnp.bfloat16)
    out_bf16 = jax.block_until_ready(eca_forward(xb, conv_weight))
    ref_bf16 = eca_reference(xb, conv_weight)
    assert jnp.allclose(out_bf16.astype(jnp.float32),
                        ref_bf16.astype(jnp.float32), atol=2e-2, rtol=2e-2)

    print("KERNEL_OK")
</pallas_src>

<mosaic_0001>
module attributes {stable_mosaic.version = 11 : i64} {
  func.func @eca_kernel(%arg0: i32, %arg1: memref<1xf32, #tpu.memory_space<smem>>, %arg2: memref<16x256xf32, #tpu.memory_space<vmem>>, %arg3: memref<16x256xf32, #tpu.memory_space<vmem>>) attributes {dimension_semantics = [#tpu.dimension_semantics<parallel>], iteration_bounds = array<i64: 1>, scalar_prefetch = 0 : i64, scratch_operands = 0 : i64, tpu.core_type = #tpu.core_type<tc>, window_params = [{transform_indices = @transform_0, window_bounds = array<i64: 1>}, {transform_indices = @transform_1, window_bounds = array<i64: 16, 256>}, {transform_indices = @transform_2, window_bounds = array<i64: 16, 256>}]} {
    %c0 = arith.constant 0 : index
    %c0_0 = arith.constant 0 : index
    %0 = vector.load %arg2[%c0, %c0_0] : memref<16x256xf32, #tpu.memory_space<vmem>>, vector<16x256xf32>
    %cst = arith.constant dense<0.000000e+00> : vector<16xf32>
    %1 = vector.multi_reduction <add>, %0, %cst [1] : vector<16x256xf32> to vector<16xf32>
    %2 = vector.shape_cast %1 : vector<16xf32> to vector<16x1xf32>
    %cst_1 = arith.constant 2.560000e+02 : f32
    %3 = vector.broadcast %cst_1 : f32 to vector<16x1xf32>
    %4 = arith.divf %2, %3 : vector<16x1xf32>
    %c0_2 = arith.constant 0 : index
    %5 = memref.load %arg1[%c0_2] : memref<1xf32, #tpu.memory_space<smem>>
    %6 = vector.broadcast %5 : f32 to vector<16x1xf32>
    %7 = arith.mulf %4, %6 : vector<16x1xf32>
    %8 = arith.negf %7 : vector<16x1xf32>
    %9 = math.exp %8 : vector<16x1xf32>
    %cst_3 = arith.constant 1.000000e+00 : f32
    %10 = vector.broadcast %cst_3 : f32 to vector<16x1xf32>
    %11 = arith.addf %10, %9 : vector<16x1xf32>
    %12 = arith.divf %10, %11 : vector<16x1xf32>
    %cst_4 = arith.constant 1.000000e+00 : f32
    %13 = vector.broadcast %cst_4 : f32 to vector<16x1xf32>
    %14 = arith.addf %12, %13 : vector<16x1xf32>
    %15 = vector.broadcast %14 : vector<16x1xf32> to vector<16x256xf32>
    %16 = arith.mulf %0, %15 : vector<16x256xf32>
    %c0_5 = arith.constant 0 : index
    %c0_6 = arith.constant 0 : index
    %17 = vector.load %arg3[%c0_5, %c0_6] : memref<16x256xf32, #tpu.memory_space<vmem>>, vector<16x256xf32>
    tpu.vector_store %arg3[%c0_5, %c0_6], %16 {strides = array<i32>} : memref<16x256xf32, #tpu.memory_space<vmem>>, vector<16x256xf32>,
    return
  }
  func.func @transform_0(%arg0: i32) -> i32 {
    %c0_i32 = arith.constant 0 : i32
    %c0_i32_0 = arith.constant 0 : i32
    return %c0_i32 : i32
  }
  func.func @transform_1(%arg0: i32) -> (i32, i32) {
    %c0_i32 = arith.constant 0 : i32
    %c0_i32_0 = arith.constant 0 : i32
    return %arg0, %c0_i32 : i32, i32
  }
  func.func @transform_2(%arg0: i32) -> (i32, i32) {
    %c0_i32 = arith.constant 0 : i32
    %c0_i32_0 = arith.constant 0 : i32
    return %arg0, %c0_i32 : i32, i32
  }
}

</mosaic_0001>

<llo_original>
// kernel: tpu_custom_call.1
$region0: #{tpu_custom_call.1}
  #allocation0 [shape = 'u32[]', space=smem, size = 0x4, offset = 0x4, fixed_abs, tag = 'smem constant byte address 0x4 - core index']
  #allocation1 [shape = 'u32[72,128]{1,0:T(1,128)}', space=vmem, size = 0x9000, scoped, tag = 'internal scratch']
  #allocation2 [shape = 'f32[1]{0:T(128)S(6)}', space=smem, size = 0x200, scoped, tag = 'scoped memory for tpu_custom_call.1']
  %s0 = inlined_call_operand.<no memory space> [shape: f32[1], index: 0, kind: input, shape index: {}]
  %s1 = inlined_call_operand.hbm [shape: f32[16,256], index: 1, kind: input, shape index: {}]
  %s2 = inlined_call_operand.hbm [shape: f32[16,256], index: 2, kind: output, shape index: {}]
  %s3 = sld [smem:[#allocation0]]
  $region22: #{tpu_custom_call.1} parent=0
    _
  %s5 = ssub.s32 1, %s3
  %s6 = scalar_select 0, %s5, %s3
  %7 = sst [smem:[#allocation2]] %s0
  $region1: #{tpu_custom_call.1} parent=0
    #allocation3 [shape = 'u8[16384]{0}', space=vmem, size = 0x4000, scoped, tag = 'input window, operand 1, single buffered']
    #allocation4 [shape = 's32[1]{0}', space=sflag, size = 0x4, scoped, tag = 'scoped memory for tpu_custom_call.1']
    #allocation5 [shape = 's32[1]{0}', space=sflag, size = 0x4, scoped, tag = 'scoped memory for tpu_custom_call.1']
    #allocation6 [shape = 'u8[16384]{0}', space=vmem, size = 0x4000, scoped, tag = 'output window, operand 0, single buffered']
    %8 = vsyncpa [#allocation4], 0
    %9 = vsyncpa [#allocation5], 0
    // Predicated region
    $region2: #{tpu_custom_call.1} parent=1 // pred_check
      _
    $region3: #{tpu_custom_call.1} parent=1 // pred_check_branch
      %11 = sbr.rel (0) target = $region5
    $region4: #{tpu_custom_call.1} parent=1 // pred_region
      _
    $region5: #{tpu_custom_call.1} parent=1 // pred_fallthru
      _
    // Predicated region
    $region6: #{tpu_custom_call.1} parent=1 // pred_check
      _
    $region7: #{tpu_custom_call.1} parent=1 // pred_check_branch
      %13 = sbr.rel (0) target = $region9
    $region8: #{tpu_custom_call.1} parent=1 // pred_region
      %15 = vsyncadd [#allocation4], 0
      %s16 = sshll.u32 %s1, 4
      %s17 = int_to_ptr.hbm [resolvable:$true] %s16
      %s18 = sshll.u32 [#allocation3], 4
      %s19 = int_to_ptr.vmem [resolvable:$true] %s18
      %24 = dma.hbm_to_vmem [thread:$0]  %s17, 512, %s19, [#allocation4], 256, 256, 16
    $region9: #{tpu_custom_call.1} parent=1 // pred_fallthru
      _
    // Predicated region
    $region10: #{tpu_custom_call.1} parent=1 // pred_check
      _
    $region11: #{tpu_custom_call.1} parent=1 // pred_check_branch
      %26 = sbr.rel (0) target = $region13
    $region12: #{tpu_custom_call.1} parent=1 // pred_region
      %28 = dma.done [#allocation4], 512
    $region13: #{tpu_custom_call.1} parent=1 // pred_fallthru
      _
    %v29 = vld [vmem:[#allocation3] sm:$0xff]
    %v30 = vld [vmem:[#allocation3 + $0x8] sm:$0xff]
    %v31 = vld [vmem:[#allocation3 + $0x10] sm:$0xff]
    %v32 = vld [vmem:[#allocation3 + $0x18] sm:$0xff]
    %v33 = vadd.f32 %v29, %v30
    %34 = vadd.xlane.f32.xlu0 %v33
    %v35 = vpop.xlane.xlu0 %34
    %v36 = vadd.f32 %v31, %v32
    %37 = vadd.xlane.f32.xlu0 %v36
    %v38 = vpop.xlane.xlu0 %37
    %v39 = vrcp.pop 256.0
    %v40 = vmul.f32 256.0, %v39
    %v41 = vsub.f32 1.0, %v40
    %v42 = vmul.f32 %v39, %v41
    %v43 = vadd.f32 %v39, %v42
    %vm44 = vweird.f32 %v39
    %v45 = vsel %vm44, %v39, %v43
    %v46 = vmul.f32 %v35, %v45
    %v47 = vmul.f32 %v38, %v45
    %s48 = sld [smem:[#allocation2]]
    %v49 = vstv %s48
    %v50 = vmul.f32 %v46, %v49
    %v51 = vmul.f32 %v47, %v49
    %v52 = vxor.u32 %v50, 2147483648
    %v53 = vxor.u32 %v51, 2147483648
    %v54 = vmul.f32 %v52, 1.442695
    %v55 = vpow.pop %v54
    %v56 = vmul.f32 %v53, 1.442695
    %v57 = vpow.pop %v56
    %v58 = vadd.f32 %v55, 1.0
    %v59 = vadd.f32 %v57, 1.0
    %v60 = vrcp.pop %v58
    %v61 = vmul.f32 %v58, %v60
    %v62 = vsub.f32 1.0, %v61
    %v63 = vmul.f32 %v60, %v62
    %v64 = vadd.f32 %v60, %v63
    %vm65 = vweird.f32 %v58
    %vm66 = vweird.f32 %v60
    %vm67 = vmor %vm65, %vm66
    %v68 = vsel %vm67, %v60, %v64
    %v69 = vand.u32 2147483647, %v58
    %vm70 = vcmp.eq.f32.partialorder %v69, 8.507059e+37
    %v71 = vand.u32 %v58, 2147483648
    %v72 = vor.u32 1.1754944e-38, %v71
    %v73 = vsel %vm70, %v72, %v68
    %v74 = vmul.f32 1.0, %v73
    %v75 = vrcp.pop %v59
    %v76 = vmul.f32 %v59, %v75
    %v77 = vsub.f32 1.0, %v76
    %v78 = vmul.f32 %v75, %v77
    %v79 = vadd.f32 %v75, %v78
    %vm80 = vweird.f32 %v59
    %vm81 = vweird.f32 %v75
    %vm82 = vmor %vm80, %vm81
    %v83 = vsel %vm82, %v75, %v79
    %v84 = vand.u32 2147483647, %v59
    %vm85 = vcmp.eq.f32.partialorder %v84, 8.507059e+37
    %v86 = vand.u32 %v59, 2147483648
    %v87 = vor.u32 1.1754944e-38, %v86
    %v88 = vsel %vm85, %v87, %v83
    %v89 = vmul.f32 1.0, %v88
    %v90 = vadd.f32 %v74, 1.0
    %v91 = vadd.f32 %v89, 1.0
    %v92 = vmul.f32 %v29, %v90
    %v93 = vmul.f32 %v30, %v90
    %v94 = vmul.f32 %v31, %v91
    %v95 = vmul.f32 %v32, %v91
    %96 = vst [vmem:[#allocation6] sm:$0xff] %v92
    %97 = vst [vmem:[#allocation6 + $0x8] sm:$0xff] %v93
    %98 = vst [vmem:[#allocation6 + $0x10] sm:$0xff] %v94
    %99 = vst [vmem:[#allocation6 + $0x18] sm:$0xff] %v95
    // Predicated region
    $region14: #{tpu_custom_call.1} parent=1 // pred_check
      _
    $region15: #{tpu_custom_call.1} parent=1 // pred_check_branch
      %101 = sbr.rel (0) target = $region17
    $region16: #{tpu_custom_call.1} parent=1 // pred_region
      %103 = vsyncadd [#allocation5], 0
      %s104 = sshll.u32 [#allocation6], 4
      %s105 = int_to_ptr.vmem [resolvable:$true] %s104
      %s106 = sshll.u32 %s2, 4
      %s107 = int_to_ptr.hbm [resolvable:$true] %s106
      %112 = dma.vmem_to_hbm [thread:$0]  %s105, 512, %s107, [#allocation5], 256, 256, 16
    $region17: #{tpu_custom_call.1} parent=1 // pred_fallthru
      _
    // Predicated region
    $region18: #{tpu_custom_call.1} parent=1 // pred_check
      _
    $region19: #{tpu_custom_call.1} parent=1 // pred_check_branch
      %114 = sbr.rel (0) target = $region21
    $region20: #{tpu_custom_call.1} parent=1 // pred_region
      %116 = dma.done [#allocation5], 512
    $region21: #{tpu_custom_call.1} parent=1 // pred_fallthru
      _
    %117 = vsyncpa [#allocation4], 1
    %118 = vsyncpa [#allocation5], 1

</llo_original>
